<compile_context>
chip_gen: v7x
topology: tpu7x:2x2x1
jax: 0.10.0
libtpu: 0.0.40
codegen_flags: <defaults>
</compile_context>

<pallas_src>
import functools
import math

import jax
import jax.numpy as jnp
from jax.experimental import pallas as pl
from jax.experimental.pallas import tpu as pltpu


def _sublane_pack(dtype):
    # fp32 -> 8, bf16 -> 16, int8/fp8 -> 32
    itemsize = jnp.dtype(dtype).itemsize
    return max(8, 32 // itemsize)


def _vmem_capacity_bytes():
    try:
        info = pltpu.get_tpu_info()
        return int(getattr(info, "vmem_capacity_bytes", 64 * 1024 * 1024))
    except Exception:
        return 64 * 1024 * 1024  # conservative (v7x-sized) fallback


def _pick_tile_rows(rows, d_hid, dtype):
    pack = _sublane_pack(dtype)
    itemsize = jnp.dtype(dtype).itemsize
    vmem_bytes = _vmem_capacity_bytes()
    # Keep (2x double-buffered input + 2x double-buffered output + ~3 fp32
    # intermediates) well under the physical capacity.
    budget = vmem_bytes // 2
    per_row = (2 + 2) * d_hid * itemsize + 3 * d_hid * 4
    tile = max(pack, (budget // per_row) // pack * pack)
    tile = min(tile, 1024)  # diminishing returns past ~512-1024 rows
    rows_pad = ((rows + pack - 1) // pack) * pack
    tile = min(tile, rows_pad)
    return tile, vmem_bytes


def _layernorm_kernel(x_ref, gamma_ref, beta_ref, o_ref, *, eps, d_hid):
    # x_ref: (tile_rows, d_hid); gamma/beta: (1, d_hid)
    g32 = gamma_ref[...].astype(jnp.float32)
    b32 = beta_ref[...].astype(jnp.float32)

    x = x_ref[...].astype(jnp.float32)
    mean = jnp.sum(x, axis=-1, keepdims=True) * jnp.float32(1.0 / d_hid)
    diff = x - mean
    # torch.std defaults to unbiased (divide by N-1)
    var = jnp.sum(diff * diff, axis=-1, keepdims=True) * jnp.float32(1.0 / (d_hid - 1))
    std = jnp.sqrt(var)
    # Per-row reciprocal (EUP) instead of a full-tile vector divide (VALU).
    inv = pl.reciprocal(std + jnp.float32(eps), approx=False)
    y = diff * inv
    o_ref[...] = (g32 * y + b32).astype(o_ref.dtype)


def layer_norm(z, gamma, beta, eps=1e-6, tile_rows=None):
    """Matches PyTorch LayerNormalization.forward:
       (z - mean) / (std_unbiased + eps) * gamma + beta, reduced over dim=-1."""
    orig_shape = z.shape
    d_hid = orig_shape[-1]
    rows = math.prod(orig_shape[:-1]) if len(orig_shape) > 1 else 1

    if tile_rows is None:
        tile_rows, vmem_bytes = _pick_tile_rows(rows, d_hid, z.dtype)
    else:
        pack = _sublane_pack(z.dtype)
        tile_rows = max(pack, (tile_rows // pack) * pack)
        vmem_bytes = _vmem_capacity_bytes()

    # cdiv grid + zero-padding of the tail rows (padded rows produce finite
    # garbage -- diff==0 -> y==0 -> beta -- and are sliced off afterwards).
    num_blocks = pl.cdiv(rows, tile_rows)
    rows_pad = num_blocks * tile_rows

    x2d = z.reshape(rows, d_hid)
    if rows_pad != rows:
        x2d = jnp.pad(x2d, ((0, rows_pad - rows), (0, 0)))

    g2d = gamma.reshape(1, d_hid)
    b2d = beta.reshape(1, d_hid)

    kernel = functools.partial(_layernorm_kernel, eps=eps, d_hid=d_hid)

    # Scoped-VMEM limit sized to the chosen tiles (defaults would reject big
    # tiles even though physical VMEM is 128 MiB on v5e/v6e, 64 MiB on v7x).
    itemsize = jnp.dtype(z.dtype).itemsize
    need = 4 * tile_rows * d_hid * itemsize + 4 * tile_rows * d_hid * 4
    vmem_limit = int(min(0.85 * vmem_bytes, max(32 * 1024 * 1024, need)))

    # TODO(synk): for d_hid < 128 (like the tiny test shape) stores are masked
    # (not lane-dense); realistic hidden sizes (multiples of 128) are unaffected.
    out2d = pl.pallas_call(
        kernel,
        out_shape=jax.ShapeDtypeStruct((rows_pad, d_hid), z.dtype),
        grid_spec=pltpu.PrefetchScalarGridSpec(
            num_scalar_prefetch=0,
            grid=(num_blocks,),
            in_specs=[
                pl.BlockSpec((tile_rows, d_hid), lambda i: (i, 0)),
                pl.BlockSpec((1, d_hid), lambda i: (0, 0)),
                pl.BlockSpec((1, d_hid), lambda i: (0, 0)),
            ],
            out_specs=pl.BlockSpec((tile_rows, d_hid), lambda i: (i, 0)),
        ),
        compiler_params=pltpu.CompilerParams(
            dimension_semantics=("parallel",),
            vmem_limit_bytes=vmem_limit,
        ),
    )(x2d, g2d, b2d)

    if rows_pad != rows:
        out2d = out2d[:rows]
    return out2d.reshape(orig_shape)


def _reference(z, gamma, beta, eps=1e-6):
    z = z.astype(jnp.float32)
    mean = jnp.mean(z, axis=-1, keepdims=True)
    # unbiased std, like torch.std default
    var = jnp.sum((z - mean) ** 2, axis=-1, keepdims=True) / (z.shape[-1] - 1)
    std = jnp.sqrt(var)
    ln = (z - mean) / (std + eps)
    return gamma * ln + beta


if __name__ == "__main__":
    key = jax.random.PRNGKey(0)
    batch, seq, d_hid = 2, 8, 32

    x = jax.random.normal(key, (batch, seq, d_hid), dtype=jnp.float32)
    # Deterministic parameter init matching nn.Parameter(torch.ones/zeros(d_hid))
    gamma = jnp.ones((d_hid,), dtype=jnp.float32)
    beta = jnp.zeros((d_hid,), dtype=jnp.float32)

    out = layer_norm(x, gamma, beta, eps=1e-6)
    out = jax.block_until_ready(out)

    ref = _reference(x, gamma, beta, eps=1e-6)
    assert out.shape == x.shape
    assert jnp.allclose(out, ref, atol=1e-5, rtol=1e-5), "mismatch vs reference"

    print("KERNEL_OK")
</pallas_src>

<mosaic_0001>
module attributes {stable_mosaic.version = 11 : i64} {
  func.func @_layernorm_kernel(%arg0: i32, %arg1: memref<16x32xf32, #tpu.memory_space<vmem>>, %arg2: memref<1x32xf32, #tpu.memory_space<vmem>>, %arg3: memref<1x32xf32, #tpu.memory_space<vmem>>, %arg4: memref<16x32xf32, #tpu.memory_space<vmem>>) attributes {dimension_semantics = [#tpu.dimension_semantics<parallel>], iteration_bounds = array<i64: 1>, scalar_prefetch = 0 : i64, scratch_operands = 0 : i64, tpu.core_type = #tpu.core_type<tc>, window_params = [{transform_indices = @transform_0, window_bounds = array<i64: 16, 32>}, {pipeline_mode = #tpu.pipeline_mode<synchronous>, transform_indices = @transform_1, window_bounds = array<i64: 1, 32>}, {pipeline_mode = #tpu.pipeline_mode<synchronous>, transform_indices = @transform_2, window_bounds = array<i64: 1, 32>}, {transform_indices = @transform_3, window_bounds = array<i64: 16, 32>}]} {
    %c0 = arith.constant 0 : index
    %c0_0 = arith.constant 0 : index
    %0 = vector.load %arg2[%c0, %c0_0] : memref<1x32xf32, #tpu.memory_space<vmem>>, vector<1x32xf32>
    %c0_1 = arith.constant 0 : index
    %c0_2 = arith.constant 0 : index
    %1 = vector.load %arg3[%c0_1, %c0_2] : memref<1x32xf32, #tpu.memory_space<vmem>>, vector<1x32xf32>
    %c0_3 = arith.constant 0 : index
    %c0_4 = arith.constant 0 : index
    %2 = vector.load %arg1[%c0_3, %c0_4] : memref<16x32xf32, #tpu.memory_space<vmem>>, vector<16x32xf32>
    %cst = arith.constant dense<0.000000e+00> : vector<16xf32>
    %3 = vector.multi_reduction <add>, %2, %cst [1] : vector<16x32xf32> to vector<16xf32>
    %4 = vector.shape_cast %3 : vector<16xf32> to vector<16x1xf32>
    %cst_5 = arith.constant 3.125000e-02 : f32
    %5 = vector.broadcast %cst_5 : f32 to vector<16x1xf32>
    %6 = arith.mulf %4, %5 : vector<16x1xf32>
    %7 = vector.broadcast %6 : vector<16x1xf32> to vector<16x32xf32>
    %8 = arith.subf %2, %7 : vector<16x32xf32>
    %9 = arith.mulf %8, %8 : vector<16x32xf32>
    %cst_6 = arith.constant dense<0.000000e+00> : vector<16xf32>
    %10 = vector.multi_reduction <add>, %9, %cst_6 [1] : vector<16x32xf32> to vector<16xf32>
    %11 = vector.shape_cast %10 : vector<16xf32> to vector<16x1xf32>
    %cst_7 = arith.constant 0.0322580636 : f32
    %12 = vector.broadcast %cst_7 : f32 to vector<16x1xf32>
    %13 = arith.mulf %11, %12 : vector<16x1xf32>
    %14 = math.sqrt %13 : vector<16x1xf32>
    %cst_8 = arith.constant 9.99999997E-7 : f32
    %15 = vector.broadcast %cst_8 : f32 to vector<16x1xf32>
    %16 = arith.addf %14, %15 : vector<16x1xf32>
    %17 = tpu.reciprocal %16 : vector<16x1xf32> -> vector<16x1xf32>
    %18 = vector.broadcast %17 : vector<16x1xf32> to vector<16x32xf32>
    %19 = arith.mulf %8, %18 : vector<16x32xf32>
    %20 = vector.broadcast %0 : vector<1x32xf32> to vector<16x32xf32>
    %21 = arith.mulf %20, %19 : vector<16x32xf32>
    %22 = vector.broadcast %1 : vector<1x32xf32> to vector<16x32xf32>
    %23 = arith.addf %21, %22 : vector<16x32xf32>
    %c0_9 = arith.constant 0 : index
    %c0_10 = arith.constant 0 : index
    %24 = vector.load %arg4[%c0_9, %c0_10] : memref<16x32xf32, #tpu.memory_space<vmem>>, vector<16x32xf32>
    tpu.vector_store %arg4[%c0_9, %c0_10], %23 {strides = array<i32>} : memref<16x32xf32, #tpu.memory_space<vmem>>, vector<16x32xf32>,
    return
  }
  func.func @transform_0(%arg0: i32) -> (i32, i32) {
    %c0_i32 = arith.constant 0 : i32
    %c0_i32_0 = arith.constant 0 : i32
    return %arg0, %c0_i32 : i32, i32
  }
  func.func @transform_1(%arg0: i32) -> (i32, i32) {
    %c0_i32 = arith.constant 0 : i32
    %c0_i32_0 = arith.constant 0 : i32
    %c0_i32_1 = arith.constant 0 : i32
    return %c0_i32, %c0_i32_0 : i32, i32
  }
  func.func @transform_2(%arg0: i32) -> (i32, i32) {
    %c0_i32 = arith.constant 0 : i32
    %c0_i32_0 = arith.constant 0 : i32
    %c0_i32_1 = arith.constant 0 : i32
    return %c0_i32, %c0_i32_0 : i32, i32
  }
  func.func @transform_3(%arg0: i32) -> (i32, i32) {
    %c0_i32 = arith.constant 0 : i32
    %c0_i32_0 = arith.constant 0 : i32
    return %arg0, %c0_i32 : i32, i32
  }
}

</mosaic_0001>

<llo_original>
// kernel: tpu_custom_call.1
$region0: #{tpu_custom_call.1}
  #allocation0 [shape = 'u32[]', space=smem, size = 0x4, offset = 0x4, fixed_abs, tag = 'smem constant byte address 0x4 - core index']
  #allocation1 [shape = 'u32[144,128]{1,0:T(1,128)}', space=vmem, size = 0x12000, scoped, tag = 'internal scratch']
  %s0 = inlined_call_operand.hbm [shape: f32[16,32], index: 0, kind: input, shape index: {}]
  %s1 = inlined_call_operand.vmem [shape: f32[1,32], index: 1, kind: input, shape index: {}]
  %s2 = inlined_call_operand.vmem [shape: f32[1,32], index: 2, kind: input, shape index: {}]
  %s3 = inlined_call_operand.hbm [shape: f32[16,32], index: 3, kind: output, shape index: {}]
  %s4 = sld [smem:[#allocation0]]
  $region26: #{tpu_custom_call.1} parent=0
    _
  %s6 = ssub.s32 1, %s4
  %s7 = scalar_select 0, %s6, %s4
  $region1: #{tpu_custom_call.1} parent=0
    #allocation2 [shape = 'u8[8192]{0}', space=vmem, size = 0x2000, scoped, tag = 'input window, operand 0, single buffered']
    #allocation3 [shape = 's32[1]{0}', space=sflag, size = 0x4, scoped, tag = 'scoped memory for tpu_custom_call.1']
    #allocation4 [shape = 's32[1]{0}', space=sflag, size = 0x4, scoped, tag = 'scoped memory for tpu_custom_call.1']
    #allocation5 [shape = 'u8[8192]{0}', space=vmem, size = 0x2000, scoped, tag = 'output window, operand 0, single buffered']
    %8 = vsyncpa [#allocation3], 0
    %9 = vsyncpa [#allocation4], 0
    // Predicated region
    $region2: #{tpu_custom_call.1} parent=1 // pred_check
      _
    $region3: #{tpu_custom_call.1} parent=1 // pred_check_branch
      %11 = sbr.rel (0) target = $region5
    $region4: #{tpu_custom_call.1} parent=1 // pred_region
      %s13 = ssub.s32 256, 256
      %14 = vsyncadd [#allocation3], %s13
      %s15 = sshll.u32 [#allocation2], 4
      %s16 = int_to_ptr.vmem [resolvable:$true] %s15
      %21 = dma.hbm_to_vmem [thread:$0]  %s0, 256, %s16, [#allocation3], 128, 128, 8
    $region5: #{tpu_custom_call.1} parent=1 // pred_fallthru
      _
    // Predicated region
    $region6: #{tpu_custom_call.1} parent=1 // pred_check
      _
    $region7: #{tpu_custom_call.1} parent=1 // pred_check_branch
      %23 = sbr.rel (0) target = $region9
    $region8: #{tpu_custom_call.1} parent=1 // pred_region
      _
    $region9: #{tpu_custom_call.1} parent=1 // pred_fallthru
      _
    // Predicated region
    $region10: #{tpu_custom_call.1} parent=1 // pred_check
      _
    $region11: #{tpu_custom_call.1} parent=1 // pred_check_branch
      %25 = sbr.rel (0) target = $region13
    $region12: #{tpu_custom_call.1} parent=1 // pred_region
      _
    $region13: #{tpu_custom_call.1} parent=1 // pred_fallthru
      _
    // Predicated region
    $region14: #{tpu_custom_call.1} parent=1 // pred_check
      _
    $region15: #{tpu_custom_call.1} parent=1 // pred_check_branch
      %27 = sbr.rel (0) target = $region17
    $region16: #{tpu_custom_call.1} parent=1 // pred_region
      %28 = dma.done [#allocation3], 256
    $region17: #{tpu_custom_call.1} parent=1 // pred_fallthru
      _
    %v29 = vld [vmem:[%s1] sm:$0x1]
    %v30 = vld [vmem:[%s2] sm:$0x1]
    %v31 = vld [vmem:[#allocation2] sm:$0xff]
    %v32 = vld [vmem:[#allocation2 + $0x8] sm:$0xff]
    %vm33 = vcmask 261120
    %v34 = vsel %vm33, %v31, 0.0
    %35 = vadd.xlane.f32.xlu0 %v34
    %v36 = vpop.xlane.xlu0 %35
    %v37 = vsel %vm33, %v32, 0.0
    %38 = vadd.xlane.f32.xlu0 %v37
    %v39 = vpop.xlane.xlu0 %38
    %v40 = vmul.f32 %v36, 0.03125
    %v41 = vmul.f32 %v39, 0.03125
    %v42 = vsub.f32 %v31, %v40
    %v43 = vsub.f32 %v32, %v41
    %v44 = vmul.f32 %v42, %v42
    %v45 = vmul.f32 %v43, %v43
    %v46 = vsel %vm33, %v44, 0.0
    %47 = vadd.xlane.f32.xlu0 %v46
    %v48 = vpop.xlane.xlu0 %47
    %v49 = vsel %vm33, %v45, 0.0
    %50 = vadd.xlane.f32.xlu0 %v49
    %v51 = vpop.xlane.xlu0 %50
    %v52 = vmul.f32 %v48, 0.032258064
    %v53 = vmul.f32 %v51, 0.032258064
    %v54 = vrsqrt.pop %v52
    %v55 = vmul.f32 %v52, %v54
    %vm56 = vcmp.eq.f32.partialorder %v52, inf
    %v57 = vsel %vm56, %v52, %v55
    %vm58 = vcmp.eq.f32.partialorder %v52, 0.0
    %v59 = vand.u32 %v52, 2147483648
    %v60 = vsel %vm58, %v59, %v57
    %v61 = vrsqrt.pop %v53
    %v62 = vmul.f32 %v53, %v61
    %vm63 = vcmp.eq.f32.partialorder %v53, inf
    %v64 = vsel %vm63, %v53, %v62
    %vm65 = vcmp.eq.f32.partialorder %v53, 0.0
    %v66 = vand.u32 %v53, 2147483648
    %v67 = vsel %vm65, %v66, %v64
    %v68 = vadd.f32 %v60, 1e-06
    %v69 = vadd.f32 %v67, 1e-06
    %v70 = vrcp.pop %v68
    %v71 = vrcp.pop %v69
    %v72 = vmul.f32 %v42, %v70
    %v73 = vmul.f32 %v43, %v71
    %v75 = vlaneseq
    %v76 = vshrl.u32 %v75, 7
    %v77 = vsub.s32 0, %v76
    %v78 = vrot.slane %v29, %v77
    %v80 = vmul.f32 %v78, %v72
    %v81 = vmul.f32 %v78, %v73
    %v83 = vlaneseq
    %v84 = vshrl.u32 %v83, 7
    %v85 = vsub.s32 0, %v84
    %v86 = vrot.slane %v30, %v85
    %v88 = vadd.f32 %v80, %v86
    %v89 = vadd.f32 %v81, %v86
    %90 = vst.msk [vmem:[#allocation5] sm:$0xff] %vm33, %v88
    %91 = vst.msk [vmem:[#allocation5 + $0x8] sm:$0xff] %vm33, %v89
    // Predicated region
    $region18: #{tpu_custom_call.1} parent=1 // pred_check
      _
    $region19: #{tpu_custom_call.1} parent=1 // pred_check_branch
      %93 = sbr.rel (0) target = $region21
    $region20: #{tpu_custom_call.1} parent=1 // pred_region
      %s95 = ssub.s32 256, 256
      %96 = vsyncadd [#allocation4], %s95
      %s97 = sshll.u32 [#allocation5], 4
      %s98 = int_to_ptr.vmem [resolvable:$true] %s97
      %103 = dma.vmem_to_hbm [thread:$0]  %s98, 256, %s3, [#allocation4], 128, 128, 8
    $region21: #{tpu_custom_call.1} parent=1 // pred_fallthru
      _
    // Predicated region
    $region22: #{tpu_custom_call.1} parent=1 // pred_check
      _
    $region23: #{tpu_custom_call.1} parent=1 // pred_check_branch
      %105 = sbr.rel (0) target = $region25
    $region24: #{tpu_custom_call.1} parent=1 // pred_region
      %106 = dma.done [#allocation4], 256
    $region25: #{tpu_custom_call.1} parent=1 // pred_fallthru
      _
    %107 = vsyncpa [#allocation3], 1
    %108 = vsyncpa [#allocation4], 1

</llo_original>
